<compile_context>
chip_gen: v5e
topology: v5e:2x2
jax: 0.10.0
libtpu: 0.0.40
codegen_flags: <defaults>
</compile_context>

<pallas_src>
import functools

import jax
import jax.numpy as jnp
from jax import lax
from jax.experimental import pallas as pl
from jax.experimental.pallas import tpu as pltpu


def _round_up(x, m):
    return ((x + m - 1) // m) * m


def _cdiv(a, b):
    return (a + b - 1) // b


# ---------------------------------------------------------------------------
# Kernels
# ---------------------------------------------------------------------------

def _ffn_kernel_fused(x_ref, w1_ref, b1_ref, w2_ref, b2_ref, g_ref, bt_ref,
                      o_ref, *, eps):
    """Weights fully VMEM-resident; 1-D grid over row tiles."""
    x = x_ref[...]                                                   # (tm, d_in)
    h = jnp.dot(x, w1_ref[...], preferred_element_type=jnp.float32)
    h = jnp.maximum(h + b1_ref[...], 0.0)                           # (tm, d_hid)
    y = jnp.dot(h.astype(w2_ref.dtype), w2_ref[...],
                preferred_element_type=jnp.float32)                 # (tm, d_in)
    # dropout == identity (eval); bias + residual, then one-pass LayerNorm.
    y = y + b2_ref[...] + x.astype(jnp.float32)
    mu = jnp.mean(y, axis=-1, keepdims=True)
    var = jnp.maximum(jnp.mean(y * y, axis=-1, keepdims=True) - mu * mu, 0.0)
    o_ref[...] = ((y - mu) * lax.rsqrt(var + eps) * g_ref[...]
                  + bt_ref[...]).astype(o_ref.dtype)


def _ffn_kernel_tiled(x_ref, w1_ref, b1_ref, w2_ref, b2_ref, g_ref, bt_ref,
                      o_ref, *scratch, eps):
    """d_hid tiled along grid axis 1 (reduction), f32 accumulation.

    When the output dtype is f32 the output block (resident across k, since its
    block index ignores k) is used directly as the accumulator; otherwise an
    f32 VMEM scratch is used.
    """
    acc_ref = scratch[0] if scratch else o_ref
    k = pl.program_id(1)

    @pl.when(k == 0)
    def _():
        acc_ref[...] = jnp.zeros_like(acc_ref)

    x = x_ref[...]                                                   # (tm, d_in)
    h = jnp.dot(x, w1_ref[...], preferred_element_type=jnp.float32)
    h = jnp.maximum(h + b1_ref[...], 0.0)                            # (tm, tk)
    acc_ref[...] += jnp.dot(h.astype(w2_ref.dtype), w2_ref[...],
                            preferred_element_type=jnp.float32)      # (tm, d_in)

    @pl.when(k == pl.num_programs(1) - 1)
    def _():
        y = acc_ref[...].astype(jnp.float32) + b2_ref[...] + x.astype(jnp.float32)
        mu = jnp.mean(y, axis=-1, keepdims=True)
        var = jnp.maximum(jnp.mean(y * y, axis=-1, keepdims=True) - mu * mu, 0.0)
        o_ref[...] = ((y - mu) * lax.rsqrt(var + eps) * g_ref[...]
                      + bt_ref[...]).astype(o_ref.dtype)


# ---------------------------------------------------------------------------
# Tiling / VMEM budgeting
# ---------------------------------------------------------------------------

def _vmem_budget_bytes():
    """~75% of per-core VMEM (leaves headroom for Mosaic internal scratch)."""
    cap = 64 * 1024 * 1024                       # v7x per-TC (smallest) default
    try:
        info_cap = int(pltpu.get_tpu_info().vmem_capacity_bytes)
        if 16 * 1024 * 1024 <= info_cap <= 256 * 1024 * 1024:
            cap = info_cap
    except Exception:
        pass
    return min(int(cap * 0.75), 96 * 1024 * 1024)


def _fused_vmem(tm, d_in, d_hid, in_b, out_b):
    return (2 * tm * d_in * in_b                 # x tile (double-buffered)
            + 2 * tm * d_in * out_b              # out tile (double-buffered)
            + 2 * 2 * d_in * d_hid * in_b        # W1 + W2 (2 pipeline buffers)
            + tm * d_hid * 4                     # h (f32)
            + 2 * tm * d_in * 4                  # f32 epilogue temps
            + 4 * (d_hid + 3 * d_in) * in_b)     # biases / LN params


def _tiled_vmem(tm, tk, d_in, d_hid, in_b, out_b, nbuf, use_scratch):
    return (2 * tm * d_in * in_b
            + 2 * tm * d_in * out_b
            + nbuf * d_in * tk * in_b            # W1 slab
            + nbuf * tk * d_in * in_b            # W2 slab
            + tm * tk * 4                        # h (f32)
            + 2 * tm * d_in * 4                  # f32 epilogue temps
            + (tm * d_in * 4 if use_scratch else 0)
            + 4 * (tk + 3 * d_in) * in_b)


def _row_tile_candidates(M):
    if M <= 256:
        return [_round_up(M, 8)]
    cands = {t for t in range(128, 1025, 128) if t <= _round_up(M, 128)}
    if M <= 1024:
        cands.add(_round_up(M, 8))               # near-exact single tile for awkward M

    def key(t):
        n = _cdiv(M, t)
        pad = (n * t - M) / (n * t)
        # prefer <=12.5% padded rows, an even number of row tiles (v7x: 2 TCs
        # share the "parallel" axis), then the largest tile.
        return (pad > 0.125, n % 2, -t)

    return sorted(cands, key=key)


def _select_tiling(M, d_in, d_hid, in_b, out_b, budget):
    use_scratch = out_b < 4
    for tm in _row_tile_candidates(M):
        # 1) weights fully resident (best: a single HBM pass over W1/W2)
        if _fused_vmem(tm, d_in, d_hid, in_b, out_b) <= budget:
            return tm, d_hid, True
        # 2) k-tiled with (triple-)buffered weight slabs
        for tk in (2048, 1024, 512, 256, 128):
            if tk >= d_hid:
                continue
            nbuf = 3 if _cdiv(d_hid, tk) >= 3 else 2
            if _tiled_vmem(tm, tk, d_in, d_hid, in_b, out_b, nbuf,
                           use_scratch) <= budget:
                return tm, tk, False
    # fallback: smallest tiles
    tm = 128 if M > 256 else _round_up(M, 8)
    if d_hid <= 128:
        return tm, d_hid, True
    return tm, 128, False


# ---------------------------------------------------------------------------
# Wrapper
# ---------------------------------------------------------------------------

@functools.partial(jax.jit, static_argnames=("eps", "tile_override"))
def positionwise_ffn(x, w1, b1, w2, b2, gamma, beta, *, eps=1e-5,
                     tile_override=None):
    """x: (B, T, d_in); w1: (d_in, d_hid); w2: (d_hid, d_in).

    Note: for the production path d_in should be a multiple of 128 so the
    output stores are lane-dense and the MXU N dimension is filled; small d_in
    (like the toy 32 below) is correct but underfills lanes.
    Pass bf16 x/W1/W2 for bf16 MXU throughput; accumulation and the
    bias/ReLU/LayerNorm epilogue stay in f32 regardless.
    """
    B, T, d_in = x.shape
    d_hid = w1.shape[1]
    M = B * T
    in_b = x.dtype.itemsize
    out_b = x.dtype.itemsize
    budget = _vmem_budget_bytes()

    if tile_override is not None:
        tm, tk = tile_override
        weights_resident = tk >= d_hid
        if weights_resident:
            tk = d_hid
    else:
        tm, tk, weights_resident = _select_tiling(M, d_in, d_hid, in_b, out_b,
                                                  budget)

    Mp = _round_up(M, tm)
    n_row_tiles = Mp // tm

    x2d = x.reshape(M, d_in)
    if Mp != M:
        x2d = jnp.pad(x2d, ((0, Mp - M), (0, 0)))

    b2r = b2.reshape(1, d_in)
    gr = gamma.reshape(1, d_in)
    btr = beta.reshape(1, d_in)

    if weights_resident:
        # --- fused path: weights DMA'd once, resident across all row tiles ---
        b1r = b1.reshape(1, d_hid)
        grid = (n_row_tiles,)
        in_specs = [
            pl.BlockSpec((tm, d_in), lambda i: (i, 0)),      # x tile
            pl.BlockSpec((d_in, d_hid), lambda i: (0, 0)),   # W1 (resident)
            pl.BlockSpec((1, d_hid), lambda i: (0, 0)),      # b1
            pl.BlockSpec((d_hid, d_in), lambda i: (0, 0)),   # W2 (resident)
            pl.BlockSpec((1, d_in), lambda i: (0, 0)),       # b2
            pl.BlockSpec((1, d_in), lambda i: (0, 0)),       # gamma
            pl.BlockSpec((1, d_in), lambda i: (0, 0)),       # beta
        ]
        out_specs = pl.BlockSpec((tm, d_in), lambda i: (i, 0))
        scratch_shapes = []
        kernel = functools.partial(_ffn_kernel_fused, eps=eps)
        dims = ("parallel",)
        footprint = _fused_vmem(tm, d_in, d_hid, in_b, out_b)
        weight_passes = 1
    else:
        # --- k-tiled path: d_hid streamed in lane-aligned slabs ---------------
        kp = _round_up(d_hid, tk)
        if kp != d_hid:
            # Zero-padded hidden units contribute exactly 0: relu(x@0+0)@0 == 0.
            w1 = jnp.pad(w1, ((0, 0), (0, kp - d_hid)))
            b1 = jnp.pad(b1, (0, kp - d_hid))
            w2 = jnp.pad(w2, ((0, kp - d_hid), (0, 0)))
        b1r = b1.reshape(1, kp)
        k_tiles = kp // tk
        nbuf = 3 if k_tiles >= 3 else 2

        def _wspec(shape, imap):
            if nbuf > 2:
                return pl.BlockSpec(shape, imap, pipeline_mode=pl.Buffered(nbuf))
            return pl.BlockSpec(shape, imap)

        grid = (n_row_tiles, k_tiles)
        in_specs = [
            pl.BlockSpec((tm, d_in), lambda i, k: (i, 0)),   # x tile (resident over k)
            _wspec((d_in, tk), lambda i, k: (0, k)),         # W1 slab
            pl.BlockSpec((1, tk), lambda i, k: (0, k)),      # b1 slab
            _wspec((tk, d_in), lambda i, k: (k, 0)),         # W2 slab
            pl.BlockSpec((1, d_in), lambda i, k: (0, 0)),    # b2
            pl.BlockSpec((1, d_in), lambda i, k: (0, 0)),    # gamma
            pl.BlockSpec((1, d_in), lambda i, k: (0, 0)),    # beta
        ]
        out_specs = pl.BlockSpec((tm, d_in), lambda i, k: (i, 0))
        use_scratch = x.dtype != jnp.float32
        scratch_shapes = ([pltpu.VMEM((tm, d_in), jnp.float32)]
                          if use_scratch else [])
        kernel = functools.partial(_ffn_kernel_tiled, eps=eps)
        dims = ("parallel", "arbitrary")
        footprint = _tiled_vmem(tm, tk, d_in, d_hid, in_b, out_b, nbuf,
                                use_scratch)
        weight_passes = n_row_tiles

    # Computed footprint + headroom (documents the tile budget); never request
    # the whole physical VMEM.
    vmem_limit = int(min(budget, max(footprint + (4 << 20), 16 << 20)))

    cost = pl.CostEstimate(
        flops=4 * M * d_in * d_hid,
        transcendentals=M,  # rsqrt per row
        bytes_accessed=(M * d_in * in_b + M * d_in * out_b
                        + weight_passes * 2 * d_in * d_hid * in_b
                        + (d_hid + 3 * d_in) * in_b),
    )

    out2d = pl.pallas_call(
        kernel,
        out_shape=jax.ShapeDtypeStruct((Mp, d_in), x.dtype),
        grid_spec=pltpu.PrefetchScalarGridSpec(
            num_scalar_prefetch=0,
            grid=grid,
            in_specs=in_specs,
            out_specs=out_specs,
            scratch_shapes=scratch_shapes,
        ),
        compiler_params=pltpu.CompilerParams(
            dimension_semantics=dims,
            vmem_limit_bytes=vmem_limit,
        ),
        cost_estimate=cost,
    )(x2d, w1, b1r, w2, b2r, gr, btr)

    return out2d[:M].reshape(B, T, d_in)


# ---------------------------------------------------------------------------
# Reference + smoke tests
# ---------------------------------------------------------------------------

def _reference(x, w1, b1, w2, b2, gamma, beta, eps=1e-5):
    x = x.astype(jnp.float32)
    h = jnp.maximum(
        jnp.einsum("btc,cd->btd", x, w1.astype(jnp.float32))
        + b1.astype(jnp.float32), 0.0)
    y = (jnp.einsum("btd,dc->btc", h, w2.astype(jnp.float32))
         + b2.astype(jnp.float32) + x)
    mu = jnp.mean(y, axis=-1, keepdims=True)
    var = jnp.mean(jnp.square(y - mu), axis=-1, keepdims=True)
    return ((y - mu) / jnp.sqrt(var + eps) * gamma.astype(jnp.float32)
            + beta.astype(jnp.float32))


def _make_inputs(B, T, d_in, d_hid, dtype, key):
    kx, k1, k2, kg, kb = jax.random.split(key, 5)
    x = jax.random.normal(kx, (B, T, d_in), jnp.float32).astype(dtype)
    w1 = (0.02 * jax.random.normal(k1, (d_in, d_hid), jnp.float32)).astype(dtype)
    b1 = jnp.zeros((d_hid,), dtype)
    w2 = (0.02 * jax.random.normal(k2, (d_hid, d_in), jnp.float32)).astype(dtype)
    b2 = jnp.zeros((d_in,), dtype)
    gamma = (1.0 + 0.1 * jax.random.normal(kg, (d_in,), jnp.float32)).astype(dtype)
    beta = (0.1 * jax.random.normal(kb, (d_in,), jnp.float32)).astype(dtype)
    return x, w1, b1, w2, b2, gamma, beta


if __name__ == "__main__":
    key = jax.random.PRNGKey(0)
    key_a, key_b = jax.random.split(key, 2)

    # 1) Toy config (d_in=32, d_hid=128, B=2, T=8), f32 — fused / weights-resident path.
    args = _make_inputs(2, 8, 32, 128, jnp.float32, key_a)
    out = jax.block_until_ready(positionwise_ffn(*args))
    ref = _reference(*args)
    assert out.shape == args[0].shape
    assert jnp.allclose(out, ref, atol=1e-4, rtol=1e-4), \
        float(jnp.max(jnp.abs(out - ref)))

    # 2) Awkward row count (M=600) + forced d_hid tiling, f32 — exercises the
    #    k-tiled, accumulate-into-output path and row padding.
    args2 = _make_inputs(2, 300, 128, 256, jnp.float32, key_b)
    out2 = jax.block_until_ready(
        positionwise_ffn(*args2, tile_override=(128, 128)))
    ref2 = _reference(*args2)
    assert jnp.allclose(out2, ref2, atol=1e-4, rtol=1e-4), \
        float(jnp.max(jnp.abs(out2 - ref2)))

    # 3) Same shapes in bf16 — exercises the k-tiled path with the f32 scratch
    #    accumulator (output dtype narrower than f32).
    args3 = _make_inputs(2, 300, 128, 256, jnp.bfloat16, key_b)
    out3 = jax.block_until_ready(
        positionwise_ffn(*args3, tile_override=(128, 128)))
    ref3 = _reference(*args3)
    assert jnp.allclose(out3.astype(jnp.float32), ref3, atol=1e-1, rtol=1e-1), \
        float(jnp.max(jnp.abs(out3.astype(jnp.float32) - ref3)))

    print("KERNEL_OK")
</pallas_src>

<mosaic_0001>
module attributes {stable_mosaic.version = 11 : i64} {
  func.func @_ffn_kernel_fused(%arg0: i32, %arg1: memref<16x32xf32, #tpu.memory_space<vmem>>, %arg2: memref<32x128xf32, #tpu.memory_space<vmem>>, %arg3: memref<1x128xf32, #tpu.memory_space<vmem>>, %arg4: memref<128x32xf32, #tpu.memory_space<vmem>>, %arg5: memref<1x32xf32, #tpu.memory_space<vmem>>, %arg6: memref<1x32xf32, #tpu.memory_space<vmem>>, %arg7: memref<1x32xf32, #tpu.memory_space<vmem>>, %arg8: memref<16x32xf32, #tpu.memory_space<vmem>>) attributes {dimension_semantics = [#tpu.dimension_semantics<parallel>], iteration_bounds = array<i64: 1>, scalar_prefetch = 0 : i64, scratch_operands = 0 : i64, tpu.core_type = #tpu.core_type<tc>, window_params = [{transform_indices = @transform_0, window_bounds = array<i64: 16, 32>}, {pipeline_mode = #tpu.pipeline_mode<synchronous>, transform_indices = @transform_1, window_bounds = array<i64: 32, 128>}, {pipeline_mode = #tpu.pipeline_mode<synchronous>, transform_indices = @transform_2, window_bounds = array<i64: 1, 128>}, {pipeline_mode = #tpu.pipeline_mode<synchronous>, transform_indices = @transform_3, window_bounds = array<i64: 128, 32>}, {pipeline_mode = #tpu.pipeline_mode<synchronous>, transform_indices = @transform_4, window_bounds = array<i64: 1, 32>}, {pipeline_mode = #tpu.pipeline_mode<synchronous>, transform_indices = @transform_5, window_bounds = array<i64: 1, 32>}, {pipeline_mode = #tpu.pipeline_mode<synchronous>, transform_indices = @transform_6, window_bounds = array<i64: 1, 32>}, {transform_indices = @transform_7, window_bounds = array<i64: 16, 32>}]} {
    %c0 = arith.constant 0 : index
    %c0_0 = arith.constant 0 : index
    %0 = vector.load %arg1[%c0, %c0_0] : memref<16x32xf32, #tpu.memory_space<vmem>>, vector<16x32xf32>
    %c0_1 = arith.constant 0 : index
    %c0_2 = arith.constant 0 : index
    %1 = vector.load %arg2[%c0_1, %c0_2] : memref<32x128xf32, #tpu.memory_space<vmem>>, vector<32x128xf32>
    %cst = arith.constant dense<0.000000e+00> : vector<16x128xf32>
    %2 = tpu.matmul %0, %1, %cst {dimension_numbers = #tpu.dot_dimension_numbers<[1], [0], [0], [1], [0, 0, 1, 1], [], []>} : vector<16x32xf32>, vector<32x128xf32>, vector<16x128xf32> -> vector<16x128xf32>
    %c0_3 = arith.constant 0 : index
    %c0_4 = arith.constant 0 : index
    %3 = vector.load %arg3[%c0_3, %c0_4] : memref<1x128xf32, #tpu.memory_space<vmem>>, vector<1x128xf32>
    %4 = vector.broadcast %3 : vector<1x128xf32> to vector<16x128xf32>
    %5 = arith.addf %2, %4 : vector<16x128xf32>
    %cst_5 = arith.constant 0.000000e+00 : f32
    %6 = vector.broadcast %cst_5 : f32 to vector<16x128xf32>
    %7 = arith.maximumf %5, %6 : vector<16x128xf32>
    %c0_6 = arith.constant 0 : index
    %c0_7 = arith.constant 0 : index
    %8 = vector.load %arg4[%c0_6, %c0_7] : memref<128x32xf32, #tpu.memory_space<vmem>>, vector<128x32xf32>
    %cst_8 = arith.constant dense<0.000000e+00> : vector<16x32xf32>
    %9 = tpu.matmul %7, %8, %cst_8 {dimension_numbers = #tpu.dot_dimension_numbers<[1], [0], [0], [1], [0, 0, 1, 1], [], []>} : vector<16x128xf32>, vector<128x32xf32>, vector<16x32xf32> -> vector<16x32xf32>
    %c0_9 = arith.constant 0 : index
    %c0_10 = arith.constant 0 : index
    %10 = vector.load %arg5[%c0_9, %c0_10] : memref<1x32xf32, #tpu.memory_space<vmem>>, vector<1x32xf32>
    %11 = vector.broadcast %10 : vector<1x32xf32> to vector<16x32xf32>
    %12 = arith.addf %9, %11 : vector<16x32xf32>
    %13 = arith.addf %12, %0 : vector<16x32xf32>
    %cst_11 = arith.constant dense<0.000000e+00> : vector<16xf32>
    %14 = vector.multi_reduction <add>, %13, %cst_11 [1] : vector<16x32xf32> to vector<16xf32>
    %15 = vector.shape_cast %14 : vector<16xf32> to vector<16x1xf32>
    %cst_12 = arith.constant 3.200000e+01 : f32
    %16 = vector.broadcast %cst_12 : f32 to vector<16x1xf32>
    %17 = arith.divf %15, %16 : vector<16x1xf32>
    %18 = arith.mulf %13, %13 : vector<16x32xf32>
    %cst_13 = arith.constant dense<0.000000e+00> : vector<16xf32>
    %19 = vector.multi_reduction <add>, %18, %cst_13 [1] : vector<16x32xf32> to vector<16xf32>
    %20 = vector.shape_cast %19 : vector<16xf32> to vector<16x1xf32>
    %cst_14 = arith.constant 3.200000e+01 : f32
    %21 = vector.broadcast %cst_14 : f32 to vector<16x1xf32>
    %22 = arith.divf %20, %21 : vector<16x1xf32>
    %23 = arith.mulf %17, %17 : vector<16x1xf32>
    %24 = arith.subf %22, %23 : vector<16x1xf32>
    %cst_15 = arith.constant 0.000000e+00 : f32
    %25 = vector.broadcast %cst_15 : f32 to vector<16x1xf32>
    %26 = arith.maximumf %24, %25 : vector<16x1xf32>
    %27 = vector.broadcast %17 : vector<16x1xf32> to vector<16x32xf32>
    %28 = arith.subf %13, %27 : vector<16x32xf32>
    %cst_16 = arith.constant 9.99999974E-6 : f32
    %29 = vector.broadcast %cst_16 : f32 to vector<16x1xf32>
    %30 = arith.addf %26, %29 : vector<16x1xf32>
    %31 = math.rsqrt %30 : vector<16x1xf32>
    %32 = vector.broadcast %31 : vector<16x1xf32> to vector<16x32xf32>
    %33 = arith.mulf %28, %32 : vector<16x32xf32>
    %c0_17 = arith.constant 0 : index
    %c0_18 = arith.constant 0 : index
    %34 = vector.load %arg6[%c0_17, %c0_18] : memref<1x32xf32, #tpu.memory_space<vmem>>, vector<1x32xf32>
    %35 = vector.broadcast %34 : vector<1x32xf32> to vector<16x32xf32>
    %36 = arith.mulf %33, %35 : vector<16x32xf32>
    %c0_19 = arith.constant 0 : index
    %c0_20 = arith.constant 0 : index
    %37 = vector.load %arg7[%c0_19, %c0_20] : memref<1x32xf32, #tpu.memory_space<vmem>>, vector<1x32xf32>
    %38 = vector.broadcast %37 : vector<1x32xf32> to vector<16x32xf32>
    %39 = arith.addf %36, %38 : vector<16x32xf32>
    %c0_21 = arith.constant 0 : index
    %c0_22 = arith.constant 0 : index
    %40 = vector.load %arg8[%c0_21, %c0_22] : memref<16x32xf32, #tpu.memory_space<vmem>>, vector<16x32xf32>
    tpu.vector_store %arg8[%c0_21, %c0_22], %39 {strides = array<i32>} : memref<16x32xf32, #tpu.memory_space<vmem>>, vector<16x32xf32>,
    return
  }
  func.func @transform_0(%arg0: i32) -> (i32, i32) {
    %c0_i32 = arith.constant 0 : i32
    %c0_i32_0 = arith.constant 0 : i32
    return %arg0, %c0_i32 : i32, i32
  }
  func.func @transform_1(%arg0: i32) -> (i32, i32) {
    %c0_i32 = arith.constant 0 : i32
    %c0_i32_0 = arith.constant 0 : i32
    %c0_i32_1 = arith.constant 0 : i32
    return %c0_i32, %c0_i32_0 : i32, i32
  }
  func.func @transform_2(%arg0: i32) -> (i32, i32) {
    %c0_i32 = arith.constant 0 : i32
    %c0_i32_0 = arith.constant 0 : i32
    %c0_i32_1 = arith.constant 0 : i32
    return %c0_i32, %c0_i32_0 : i32, i32
  }
  func.func @transform_3(%arg0: i32) -> (i32, i32) {
    %c0_i32 = arith.constant 0 : i32
    %c0_i32_0 = arith.constant 0 : i32
    %c0_i32_1 = arith.constant 0 : i32
    return %c0_i32, %c0_i32_0 : i32, i32
  }
  func.func @transform_4(%arg0: i32) -> (i32, i32) {
    %c0_i32 = arith.constant 0 : i32
    %c0_i32_0 = arith.constant 0 : i32
    %c0_i32_1 = arith.constant 0 : i32
    return %c0_i32, %c0_i32_0 : i32, i32
  }
  func.func @transform_5(%arg0: i32) -> (i32, i32) {
    %c0_i32 = arith.constant 0 : i32
    %c0_i32_0 = arith.constant 0 : i32
    %c0_i32_1 = arith.constant 0 : i32
    return %c0_i32, %c0_i32_0 : i32, i32
  }
  func.func @transform_6(%arg0: i32) -> (i32, i32) {
    %c0_i32 = arith.constant 0 : i32
    %c0_i32_0 = arith.constant 0 : i32
    %c0_i32_1 = arith.constant 0 : i32
    return %c0_i32, %c0_i32_0 : i32, i32
  }
  func.func @transform_7(%arg0: i32) -> (i32, i32) {
    %c0_i32 = arith.constant 0 : i32
    %c0_i32_0 = arith.constant 0 : i32
    return %arg0, %c0_i32 : i32, i32
  }
}

</mosaic_0001>

<llo_original>
// kernel: positionwise_ffn.1
$region0: #{positionwise_ffn.1}
  #allocation0 [shape = 'u32[]', space=smem, size = 0x4, offset = 0x4, fixed_abs, tag = 'smem constant byte address 0x4 - core index']
  #allocation1 [shape = 'u32[72,128]{1,0:T(1,128)}', space=vmem, size = 0x9000, scoped, tag = 'internal scratch']
  %s0 = inlined_call_operand.vmem [shape: f32[16,32], index: 0, kind: input, shape index: {}]
  %s1 = inlined_call_operand.vmem [shape: f32[32,128], index: 1, kind: input, shape index: {}]
  %s2 = inlined_call_operand.vmem [shape: f32[1,128], index: 2, kind: input, shape index: {}]
  %s3 = inlined_call_operand.vmem [shape: f32[128,32], index: 3, kind: input, shape index: {}]
  %s4 = inlined_call_operand.vmem [shape: f32[1,32], index: 4, kind: input, shape index: {}]
  %s5 = inlined_call_operand.vmem [shape: f32[1,32], index: 5, kind: input, shape index: {}]
  %s6 = inlined_call_operand.vmem [shape: f32[1,32], index: 6, kind: input, shape index: {}]
  %s7 = inlined_call_operand.hbm [shape: f32[16,32], index: 7, kind: output, shape index: {}]
  %s8 = sld [smem:[#allocation0]]
  $region38: #{positionwise_ffn.1} parent=0
    _
  %s10 = ssub.s32 1, %s8
  %s11 = scalar_select 0, %s10, %s8
  $region1: #{positionwise_ffn.1} parent=0
    #allocation2 [shape = 'u8[8192]{0}', space=vmem, size = 0x2000, scoped, tag = 'output window, operand 0, single buffered']
    #allocation3 [shape = 's32[1]{0}', space=sflag, size = 0x4, scoped, tag = 'scoped memory for positionwise_ffn.1']
    %12 = vsyncpa [#allocation3], 0
    // Predicated region
    $region2: #{positionwise_ffn.1} parent=1 // pred_check
      _
    $region3: #{positionwise_ffn.1} parent=1 // pred_check_branch
      %14 = sbr.rel (0) target = $region5
    $region4: #{positionwise_ffn.1} parent=1 // pred_region
      _
    $region5: #{positionwise_ffn.1} parent=1 // pred_fallthru
      _
    // Predicated region
    $region6: #{positionwise_ffn.1} parent=1 // pred_check
      _
    $region7: #{positionwise_ffn.1} parent=1 // pred_check_branch
      %16 = sbr.rel (0) target = $region9
    $region8: #{positionwise_ffn.1} parent=1 // pred_region
      _
    $region9: #{positionwise_ffn.1} parent=1 // pred_fallthru
      _
    // Predicated region
    $region10: #{positionwise_ffn.1} parent=1 // pred_check
      _
    $region11: #{positionwise_ffn.1} parent=1 // pred_check_branch
      %18 = sbr.rel (0) target = $region13
    $region12: #{positionwise_ffn.1} parent=1 // pred_region
      _
    $region13: #{positionwise_ffn.1} parent=1 // pred_fallthru
      _
    // Predicated region
    $region14: #{positionwise_ffn.1} parent=1 // pred_check
      _
    $region15: #{positionwise_ffn.1} parent=1 // pred_check_branch
      %20 = sbr.rel (0) target = $region17
    $region16: #{positionwise_ffn.1} parent=1 // pred_region
      _
    $region17: #{positionwise_ffn.1} parent=1 // pred_fallthru
      _
    // Predicated region
    $region18: #{positionwise_ffn.1} parent=1 // pred_check
      _
    $region19: #{positionwise_ffn.1} parent=1 // pred_check_branch
      %22 = sbr.rel (0) target = $region21
    $region20: #{positionwise_ffn.1} parent=1 // pred_region
      _
    $region21: #{positionwise_ffn.1} parent=1 // pred_fallthru
      _
    // Predicated region
    $region22: #{positionwise_ffn.1} parent=1 // pred_check
      _
    $region23: #{positionwise_ffn.1} parent=1 // pred_check_branch
      %24 = sbr.rel (0) target = $region25
    $region24: #{positionwise_ffn.1} parent=1 // pred_region
      _
    $region25: #{positionwise_ffn.1} parent=1 // pred_fallthru
      _
    // Predicated region
    $region26: #{positionwise_ffn.1} parent=1 // pred_check
      _
    $region27: #{positionwise_ffn.1} parent=1 // pred_check_branch
      %26 = sbr.rel (0) target = $region29
    $region28: #{positionwise_ffn.1} parent=1 // pred_region
      _
    $region29: #{positionwise_ffn.1} parent=1 // pred_fallthru
      _
    %v27 = vld [vmem:[%s0] sm:$0xff]
    %v28 = vld [vmem:[%s0 + $0x8] sm:$0xff]
    %v29 = vld [vmem:[%s1] sm:$0xff]
    %v30 = vld [vmem:[%s1 + $0x8] sm:$0xff]
    %v31 = vld [vmem:[%s1 + $0x10] sm:$0xff]
    %v32 = vld [vmem:[%s1 + $0x18] sm:$0xff]
    %v33 = vld [vmem:[%s2] sm:$0x1]
    %v35 = vperm.slane %v33, 0
    %vm37 = vcmask 261120
    %v39 = vsel %vm37, %v27, 0
    %v42 = vsel %vm37, %v28, 0
    %44 = vmatpush.msra.mxu0 0.0
    %45 = vmatpush.msra.mxu0 0.0
    %46 = vmatpush.msra.mxu0 0.0
    %47 = vmatpush.msra.mxu0 0.0
    %48 = vmatpush.msra.mxu0 0.0
    %49 = vmatpush.msra.mxu0 0.0
    %50 = vmatpush.msra.mxu0 0.0
    %51 = vmatpush.msra.mxu0 0.0
    %52 = vmatpush.msra.mxu0 0.0
    %53 = vmatpush.msra.mxu0 0.0
    %54 = vmatpush.msra.mxu0 0.0
    %55 = vmatpush.msra.mxu0 0.0
    %56 = vmatpush.msra.mxu0 %v32
    %57 = vmatpush.msra.mxu0 %v31
    %58 = vmatpush.msra.mxu0 %v30
    %59 = vmatpush.msra.mxu0 %v29
    %60 = vmatmul.f32.gmra.mxu0 %v39
    %v61 = vpop.f32.mrf.mxu0
    %v62 = vadd.f32 %v35, %v61
    %63 = vmatmul.f32.gmra.mxu0 %v42
    %v64 = vpop.f32.mrf.mxu0
    %v65 = vadd.f32 %v35, %v64
    %66 = vdwg.mxu0
    %v67 = vmax.f32 %v62, 0.0
    %v68 = vmax.f32 %v65, 0.0
    %v69 = vld [vmem:[%s3] sm:$0xff]
    %v70 = vld [vmem:[%s3 + $0x8] sm:$0xff]
    %v71 = vld [vmem:[%s3 + $0x10] sm:$0xff]
    %v72 = vld [vmem:[%s3 + $0x18] sm:$0xff]
    %v73 = vld [vmem:[%s3 + $0x20] sm:$0xff]
    %v74 = vld [vmem:[%s3 + $0x28] sm:$0xff]
    %v75 = vld [vmem:[%s3 + $0x30] sm:$0xff]
    %v76 = vld [vmem:[%s3 + $0x38] sm:$0xff]
    %v77 = vld [vmem:[%s3 + $0x40] sm:$0xff]
    %v78 = vld [vmem:[%s3 + $0x48] sm:$0xff]
    %v79 = vld [vmem:[%s3 + $0x50] sm:$0xff]
    %v80 = vld [vmem:[%s3 + $0x58] sm:$0xff]
    %v81 = vld [vmem:[%s3 + $0x60] sm:$0xff]
    %v82 = vld [vmem:[%s3 + $0x68] sm:$0xff]
    %v83 = vld [vmem:[%s3 + $0x70] sm:$0xff]
    %v84 = vld [vmem:[%s3 + $0x78] sm:$0xff]
    %v85 = vld [vmem:[%s4] sm:$0x1]
    %v87 = vperm.slane %v85, 0
    %89 = vmatpush.msra.mxu0 %v84
    %90 = vmatpush.msra.mxu0 %v83
    %91 = vmatpush.msra.mxu0 %v82
    %92 = vmatpush.msra.mxu0 %v81
    %93 = vmatpush.msra.mxu0 %v80
    %94 = vmatpush.msra.mxu0 %v79
    %95 = vmatpush.msra.mxu0 %v78
    %96 = vmatpush.msra.mxu0 %v77
    %97 = vmatpush.msra.mxu0 %v76
    %98 = vmatpush.msra.mxu0 %v75
    %99 = vmatpush.msra.mxu0 %v74
    %100 = vmatpush.msra.mxu0 %v73
    %101 = vmatpush.msra.mxu0 %v72
    %102 = vmatpush.msra.mxu0 %v71
    %103 = vmatpush.msra.mxu0 %v70
    %104 = vmatpush.msra.mxu0 %v69
    %105 = vmatmul.f32.gmra.mxu0 %v67
    %v106 = vpop.f32.mrf.mxu0
    %v107 = vadd.f32 %v87, %v106
    %108 = vmatmul.f32.gmra.mxu0 %v68
    %v109 = vpop.f32.mrf.mxu0
    %v110 = vadd.f32 %v87, %v109
    %111 = vdwg.mxu0
    %v112 = vadd.f32 %v107, %v27
    %v113 = vadd.f32 %v110, %v28
    %v114 = vsel %vm37, %v112, 0.0
    %115 = vadd.xlane.f32.xlu0 %v114
    %v116 = vpop.xlane.xlu0 %115
    %v117 = vsel %vm37, %v113, 0.0
    %118 = vadd.xlane.f32.xlu0 %v117
    %v119 = vpop.xlane.xlu0 %118
    %v120 = vrcp.pop 32.0
    %v121 = vmul.f32 32.0, %v120
    %v122 = vsub.f32 1.0, %v121
    %v123 = vmul.f32 %v120, %v122
    %v124 = vadd.f32 %v120, %v123
    %vm125 = vweird.f32 %v120
    %v126 = vsel %vm125, %v120, %v124
    %v127 = vmul.f32 %v116, %v126
    %v128 = vmul.f32 %v119, %v126
    %v129 = vmul.f32 %v112, %v112
    %v130 = vmul.f32 %v113, %v113
    %v131 = vsel %vm37, %v129, 0.0
    %132 = vadd.xlane.f32.xlu0 %v131
    %v133 = vpop.xlane.xlu0 %132
    %v134 = vsel %vm37, %v130, 0.0
    %135 = vadd.xlane.f32.xlu0 %v134
    %v136 = vpop.xlane.xlu0 %135
    %v137 = vmul.f32 %v133, %v126
    %v138 = vmul.f32 %v136, %v126
    %v139 = vmul.f32 %v127, %v127
    %v140 = vmul.f32 %v128, %v128
    %v141 = vsub.f32 %v137, %v139
    %v142 = vsub.f32 %v138, %v140
    %v143 = vmax.f32 %v141, 0.0
    %v144 = vmax.f32 %v142, 0.0
    %v145 = vsub.f32 %v112, %v127
    %v146 = vsub.f32 %v113, %v128
    %v147 = vadd.f32 %v143, 1e-05
    %v148 = vadd.f32 %v144, 1e-05
    %v149 = vrsqrt.pop %v147
    %v150 = vmul.f32 %v149, %v147
    %v151 = vmul.f32 %v150, %v149
    %v152 = vmul.f32 0.5, %v151
    %v153 = vsub.f32 1.5, %v152
    %v154 = vmul.f32 %v149, %v153
    %vm155 = vweird.f32 %v147
    %vm156 = vweird.f32 %v149
    %vm157 = vmor %vm155, %vm156
    %v158 = vsel %vm157, %v149, %v154
    %v159 = vrsqrt.pop %v148
    %v160 = vmul.f32 %v159, %v148
    %v161 = vmul.f32 %v160, %v159
    %v162 = vmul.f32 0.5, %v161
    %v163 = vsub.f32 1.5, %v162
    %v164 = vmul.f32 %v159, %v163
    %vm165 = vweird.f32 %v148
    %vm166 = vweird.f32 %v159
    %vm167 = vmor %vm165, %vm166
    %v168 = vsel %vm167, %v159, %v164
    %v169 = vmul.f32 %v145, %v158
    %v170 = vmul.f32 %v146, %v168
    %v171 = vld [vmem:[%s5] sm:$0x1]
    %v173 = vperm.slane %v171, 0
    %v175 = vmul.f32 %v169, %v173
    %v176 = vmul.f32 %v170, %v173
    %v177 = vld [vmem:[%s6] sm:$0x1]
    %v179 = vperm.slane %v177, 0
    %v181 = vadd.f32 %v175, %v179
    %v182 = vadd.f32 %v176, %v179
    %183 = vst.msk [vmem:[#allocation2] sm:$0xff] %vm37, %v181
    %184 = vst.msk [vmem:[#allocation2 + $0x8] sm:$0xff] %vm37, %v182
    // Predicated region
    $region30: #{positionwise_ffn.1} parent=1 // pred_check
      _
    $region31: #{positionwise_ffn.1} parent=1 // pred_check_branch
      %186 = sbr.rel (0) target = $region33
    $region32: #{positionwise_ffn.1} parent=1 // pred_region
      %188 = vsyncadd [#allocation3], 0
      %s189 = sshll.u32 [#allocation2], 4
      %s190 = int_to_ptr.vmem [resolvable:$true] %s189
      %s191 = sshll.u32 %s7, 4
      %s192 = int_to_ptr.hbm [resolvable:$true] %s191
      %197 = dma.vmem_to_hbm [thread:$0]  %s190, 256, %s192, [#allocation3], 128, 128, 8
    $region33: #{positionwise_ffn.1} parent=1 // pred_fallthru
      _
    // Predicated region
    $region34: #{positionwise_ffn.1} parent=1 // pred_check
      _
    $region35: #{positionwise_ffn.1} parent=1 // pred_check_branch
      %199 = sbr.rel (0) target = $region37
    $region36: #{positionwise_ffn.1} parent=1 // pred_region
      %201 = dma.done [#allocation3], 256
    $region37: #{positionwise_ffn.1} parent=1 // pred_fallthru
      _
    %202 = vsyncpa [#allocation3], 1

</llo_original>
